<compile_context>
chip_gen: v7x
topology: tpu7x:2x2x1
jax: 0.10.0
libtpu: 0.0.40
codegen_flags: <defaults>
</compile_context>

<pallas_src>
import functools

import jax
import jax.numpy as jnp
from jax import lax
from jax.experimental import pallas as pl
from jax.experimental.pallas import tpu as pltpu


def _round_up(x, m):
    return ((x + m - 1) // m) * m


def _pick_batch_block(n, max_block=8):
    """Images per grid step: as large as possible, but keep >= 2 grid steps
    (v7x megacore) and divide the batch exactly."""
    if n <= 1:
        return 1
    cap = max(1, min(max_block, n // 2))
    for b in range(cap, 0, -1):
        if n % b == 0:
            return b
    return 1


# ----------------------------------------------------------------------------
# Fused kernel: encoder (3x3 conv + bias + ReLU) and ALL task decoders
# (concatenated 1x1 convs) for B batch elements, lane-dense (Ct_pad, B*Sp) out.
# ----------------------------------------------------------------------------
def _fused_mtl_kernel(xf_ref, we_ref, be_ref, wd_ref, bd_ref, o_ref, patch_ref,
                      *, B, Cin, Wp, Sp):
    # xf_ref   : (B, Cin, Spad)    channels-first, spatially padded + flattened
    # we_ref   : (Chid, 9*Cin)     encoder 3x3 weights, im2col layout, transposed
    # be_ref   : (Chid, 1)         encoder bias
    # wd_ref   : (Ct_pad, Chid)    all decoder 1x1 weights (concat + zero-pad)
    # bd_ref   : (Ct_pad, 1)       all decoder biases (concat + zero-pad)
    # o_ref    : (1, Ct_pad, B*Sp) lane-dense fused output
    # patch_ref: (9*Cin, B*Sp)     transposed im2col scratch slab

    # im2col: each tap is a contiguous lane slice of the flattened padded row,
    # stored as a lane-dense row block of the transposed slab (no relayouts,
    # no narrow masked column writes).
    for b in range(B):
        for ky in range(3):
            for kx in range(3):
                tap = ky * 3 + kx
                off = ky * Wp + kx
                patch_ref[tap * Cin:(tap + 1) * Cin, b * Sp:(b + 1) * Sp] = (
                    xf_ref[b, :, off:off + Sp].astype(patch_ref.dtype))

    # Shared encoder: ONE MXU matmul over K = 9*Cin, f32 accumulation.
    enc = jnp.dot(we_ref[...].astype(jnp.float32), patch_ref[...],
                  preferred_element_type=jnp.float32)            # (Chid, B*Sp)
    enc = jnp.maximum(enc + be_ref[...].astype(jnp.float32), 0.0)

    # All task decoders fused into ONE plain matmul (no transposed contraction).
    out = jnp.dot(wd_ref[...].astype(jnp.float32), enc,
                  preferred_element_type=jnp.float32)            # (Ct_pad, B*Sp)
    out = out + bd_ref[...].astype(jnp.float32)
    o_ref[0] = out.astype(o_ref.dtype)


# ----------------------------------------------------------------------------
# MTLSharedEnc forward: one fused pallas_call, per-task outputs sliced out of
# the lane-dense (G, Ct_pad, B*Sp) slab with pure reshape/slice.
# ----------------------------------------------------------------------------
@jax.jit
def mtl_shared_enc_forward(x_nchw, params):
    N, Cin, H, W = x_nchw.shape
    Hp, Wp = H + 2, W + 2
    Mimg = H * Wp                          # flat output span per image (incl. wrap cols)
    Sp = _round_up(Mimg, 128)              # lane-aligned per-image block width
    max_off = 2 * Wp + 2                   # largest tap offset into the flat row
    Spad = _round_up(Sp + max_off, 128)    # padded flat input length

    enc_w = params["enc_w"]                # (3, 3, Cin, Chid) HWIO
    Chid = enc_w.shape[-1]
    we_t = enc_w.reshape(9 * Cin, Chid).T  # (Chid, 9*Cin); rows match slab layout
    be = params["enc_b"].reshape(Chid, 1)

    tasks = list(params["decoders"].keys())
    couts = [int(params["decoders"][t][0].shape[-1]) for t in tasks]
    Ct = sum(couts)
    Ct_pad = _round_up(Ct, 8)              # sublane-aligned -> unmasked output stores
    wd_t = jnp.concatenate([params["decoders"][t][0] for t in tasks], axis=1).T
    wd_t = jnp.pad(wd_t, ((0, Ct_pad - Ct), (0, 0)))             # (Ct_pad, Chid)
    bd = jnp.concatenate([params["decoders"][t][1] for t in tasks])
    bd = jnp.pad(bd, (0, Ct_pad - Ct)).reshape(Ct_pad, 1)

    # Channels-first spatial pad + row-major flatten (pure layout, no transpose).
    x_pad = jnp.pad(x_nchw, ((0, 0), (0, 0), (1, 1), (1, 1)))    # (N, Cin, Hp, Wp)
    x_flat = x_pad.reshape(N, Cin, Hp * Wp)
    x_flat = jnp.pad(x_flat, ((0, 0), (0, 0), (0, Spad - Hp * Wp)))

    B = _pick_batch_block(N)               # images per grid step; grid stays >= 2
    G = N // B

    cost = pl.CostEstimate(
        flops=2 * N * Sp * (9 * Cin * Chid + Chid * Ct_pad),
        transcendentals=0,
        bytes_accessed=4 * (x_flat.size + we_t.size + be.size + wd_t.size
                            + bd.size + N * Ct_pad * Sp),
    )

    out = pl.pallas_call(
        functools.partial(_fused_mtl_kernel, B=B, Cin=Cin, Wp=Wp, Sp=Sp),
        out_shape=jax.ShapeDtypeStruct((G, Ct_pad, B * Sp), x_nchw.dtype),
        grid_spec=pltpu.PrefetchScalarGridSpec(
            num_scalar_prefetch=0,
            grid=(G,),
            in_specs=[
                pl.BlockSpec((B, Cin, Spad), lambda g: (g, 0, 0)),
                pl.BlockSpec((Chid, 9 * Cin), lambda g: (0, 0)),
                pl.BlockSpec((Chid, 1), lambda g: (0, 0)),
                pl.BlockSpec((Ct_pad, Chid), lambda g: (0, 0)),
                pl.BlockSpec((Ct_pad, 1), lambda g: (0, 0)),
            ],
            out_specs=pl.BlockSpec((1, Ct_pad, B * Sp), lambda g: (g, 0, 0)),
            scratch_shapes=[pltpu.VMEM((9 * Cin, B * Sp), jnp.float32)],
        ),
        compiler_params=pltpu.CompilerParams(
            dimension_semantics=("parallel",),
        ),
        cost_estimate=cost,
    )(x_flat, we_t, be, wd_t, bd)

    # (G, Ct_pad, B*Sp) -> (N, Ct_pad, H, W): split lanes per image, drop the
    # lane padding and the two wrap columns per row.  Pure slice/reshape.
    out = out.reshape(G, Ct_pad, B, Sp).transpose(0, 2, 1, 3).reshape(N, Ct_pad, Sp)
    out = out[:, :, :Mimg].reshape(N, Ct_pad, H, Wp)[:, :, :, :W]

    outputs = {}
    off = 0
    for t, c in zip(tasks, couts):
        outputs[t] = out[:, off:off + c]
        off += c
    return outputs


# ----------------------------------------------------------------------------
# Pure-JAX reference (lax.conv) used for a correctness check only.
# ----------------------------------------------------------------------------
def _reference_forward(x_nchw, params):
    x_nhwc = jnp.transpose(x_nchw, (0, 2, 3, 1))
    dn = ("NHWC", "HWIO", "NHWC")
    enc = lax.conv_general_dilated(
        x_nhwc, params["enc_w"], window_strides=(1, 1), padding="SAME",
        dimension_numbers=dn,
    ) + params["enc_b"]
    enc = jnp.maximum(enc, 0.0)
    outs = {}
    for task, (w, b) in params["decoders"].items():
        o = lax.conv_general_dilated(
            enc, w.reshape(1, 1, *w.shape), window_strides=(1, 1),
            padding="VALID", dimension_numbers=dn,
        ) + b
        outs[task] = jnp.transpose(o, (0, 3, 1, 2))
    return outs


if __name__ == "__main__":
    # Small deterministic shapes: batch=2, Cin=4, H=W=16, hidden=32.
    N, Cin, H, W = 2, 4, 16, 16
    Chid = 32
    task_channels = {"seg": 8, "depth": 1}

    key = jax.random.PRNGKey(0)
    k_x, k_ew, k_eb, k_dw, k_db = jax.random.split(key, 5)

    x = jax.random.normal(k_x, (N, Cin, H, W), dtype=jnp.float32)

    enc_w = jax.random.normal(k_ew, (3, 3, Cin, Chid), dtype=jnp.float32) * 0.1
    enc_b = jax.random.normal(k_eb, (Chid,), dtype=jnp.float32) * 0.1

    decoders = {}
    dw_keys = jax.random.split(k_dw, len(task_channels))
    db_keys = jax.random.split(k_db, len(task_channels))
    for i, (task, cout) in enumerate(task_channels.items()):
        w = jax.random.normal(dw_keys[i], (Chid, cout), dtype=jnp.float32) * 0.1
        b = jax.random.normal(db_keys[i], (cout,), dtype=jnp.float32) * 0.1
        decoders[task] = (w, b)

    params = {"enc_w": enc_w, "enc_b": enc_b, "decoders": decoders}

    outputs = mtl_shared_enc_forward(x, params)
    outputs = jax.tree_util.tree_map(jax.block_until_ready, outputs)

    # Sanity check against a pure-JAX reference (all f32 -> tight tolerance).
    ref = _reference_forward(x, params)
    for task in task_channels:
        assert outputs[task].shape == (N, task_channels[task], H, W)
        err = jnp.max(jnp.abs(outputs[task] - ref[task]))
        assert err < 1e-4, f"task {task} mismatch: {err}"

    print("KERNEL_OK")
</pallas_src>

<mosaic_0001>
module attributes {stable_mosaic.version = 11 : i64} {
  func.func @_fused_mtl_kernel(%arg0: i32, %arg1: memref<1x4x512xf32, #tpu.memory_space<vmem>>, %arg2: memref<32x36xf32, #tpu.memory_space<vmem>>, %arg3: memref<32x1xf32, #tpu.memory_space<vmem>>, %arg4: memref<16x32xf32, #tpu.memory_space<vmem>>, %arg5: memref<16x1xf32, #tpu.memory_space<vmem>>, %arg6: memref<1x16x384xf32, #tpu.memory_space<vmem>>, %arg7: memref<36x384xf32, #tpu.memory_space<vmem>>) attributes {dimension_semantics = [#tpu.dimension_semantics<parallel>], iteration_bounds = array<i64: 2>, scalar_prefetch = 0 : i64, scratch_operands = 1 : i64, tpu.core_type = #tpu.core_type<tc>, window_params = [{transform_indices = @transform_0, window_bounds = array<i64: 1, 4, 512>}, {pipeline_mode = #tpu.pipeline_mode<synchronous>, transform_indices = @transform_1, window_bounds = array<i64: 32, 36>}, {pipeline_mode = #tpu.pipeline_mode<synchronous>, transform_indices = @transform_2, window_bounds = array<i64: 32, 1>}, {pipeline_mode = #tpu.pipeline_mode<synchronous>, transform_indices = @transform_3, window_bounds = array<i64: 16, 32>}, {pipeline_mode = #tpu.pipeline_mode<synchronous>, transform_indices = @transform_4, window_bounds = array<i64: 16, 1>}, {transform_indices = @transform_5, window_bounds = array<i64: 1, 16, 384>}]} {
    %c0 = arith.constant 0 : index
    %c0_0 = arith.constant 0 : index
    %c0_1 = arith.constant 0 : index
    %0 = vector.load %arg1[%c0, %c0_0, %c0_1] : memref<1x4x512xf32, #tpu.memory_space<vmem>>, vector<1x4x384xf32>
    %1 = vector.shape_cast %0 : vector<1x4x384xf32> to vector<4x384xf32>
    %c0_2 = arith.constant 0 : index
    %c0_3 = arith.constant 0 : index
    %2 = vector.load %arg7[%c0_2, %c0_3] : memref<36x384xf32, #tpu.memory_space<vmem>>, vector<4x384xf32>
    tpu.vector_store %arg7[%c0_2, %c0_3], %1 {strides = array<i32>} : memref<36x384xf32, #tpu.memory_space<vmem>>, vector<4x384xf32>,
    %c0_4 = arith.constant 0 : index
    %c0_5 = arith.constant 0 : index
    %c1 = arith.constant 1 : index
    %3 = vector.load %arg1[%c0_4, %c0_5, %c1] : memref<1x4x512xf32, #tpu.memory_space<vmem>>, vector<1x4x384xf32>
    %4 = vector.shape_cast %3 : vector<1x4x384xf32> to vector<4x384xf32>
    %c4 = arith.constant 4 : index
    %c0_6 = arith.constant 0 : index
    %5 = vector.load %arg7[%c4, %c0_6] : memref<36x384xf32, #tpu.memory_space<vmem>>, vector<4x384xf32>
    tpu.vector_store %arg7[%c4, %c0_6], %4 {strides = array<i32>} : memref<36x384xf32, #tpu.memory_space<vmem>>, vector<4x384xf32>,
    %c0_7 = arith.constant 0 : index
    %c0_8 = arith.constant 0 : index
    %c2 = arith.constant 2 : index
    %6 = vector.load %arg1[%c0_7, %c0_8, %c2] : memref<1x4x512xf32, #tpu.memory_space<vmem>>, vector<1x4x384xf32>
    %7 = vector.shape_cast %6 : vector<1x4x384xf32> to vector<4x384xf32>
    %c8 = arith.constant 8 : index
    %c0_9 = arith.constant 0 : index
    %8 = vector.load %arg7[%c8, %c0_9] : memref<36x384xf32, #tpu.memory_space<vmem>>, vector<4x384xf32>
    tpu.vector_store %arg7[%c8, %c0_9], %7 {strides = array<i32>} : memref<36x384xf32, #tpu.memory_space<vmem>>, vector<4x384xf32>,
    %c0_10 = arith.constant 0 : index
    %c0_11 = arith.constant 0 : index
    %c18 = arith.constant 18 : index
    %9 = vector.load %arg1[%c0_10, %c0_11, %c18] : memref<1x4x512xf32, #tpu.memory_space<vmem>>, vector<1x4x384xf32>
    %10 = vector.shape_cast %9 : vector<1x4x384xf32> to vector<4x384xf32>
    %c12 = arith.constant 12 : index
    %c0_12 = arith.constant 0 : index
    %11 = vector.load %arg7[%c12, %c0_12] : memref<36x384xf32, #tpu.memory_space<vmem>>, vector<4x384xf32>
    tpu.vector_store %arg7[%c12, %c0_12], %10 {strides = array<i32>} : memref<36x384xf32, #tpu.memory_space<vmem>>, vector<4x384xf32>,
    %c0_13 = arith.constant 0 : index
    %c0_14 = arith.constant 0 : index
    %c19 = arith.constant 19 : index
    %12 = vector.load %arg1[%c0_13, %c0_14, %c19] : memref<1x4x512xf32, #tpu.memory_space<vmem>>, vector<1x4x384xf32>
    %13 = vector.shape_cast %12 : vector<1x4x384xf32> to vector<4x384xf32>
    %c16 = arith.constant 16 : index
    %c0_15 = arith.constant 0 : index
    %14 = vector.load %arg7[%c16, %c0_15] : memref<36x384xf32, #tpu.memory_space<vmem>>, vector<4x384xf32>
    tpu.vector_store %arg7[%c16, %c0_15], %13 {strides = array<i32>} : memref<36x384xf32, #tpu.memory_space<vmem>>, vector<4x384xf32>,
    %c0_16 = arith.constant 0 : index
    %c0_17 = arith.constant 0 : index
    %c20 = arith.constant 20 : index
    %15 = vector.load %arg1[%c0_16, %c0_17, %c20] : memref<1x4x512xf32, #tpu.memory_space<vmem>>, vector<1x4x384xf32>
    %16 = vector.shape_cast %15 : vector<1x4x384xf32> to vector<4x384xf32>
    %c20_18 = arith.constant 20 : index
    %c0_19 = arith.constant 0 : index
    %17 = vector.load %arg7[%c20_18, %c0_19] : memref<36x384xf32, #tpu.memory_space<vmem>>, vector<4x384xf32>
    tpu.vector_store %arg7[%c20_18, %c0_19], %16 {strides = array<i32>} : memref<36x384xf32, #tpu.memory_space<vmem>>, vector<4x384xf32>,
    %c0_20 = arith.constant 0 : index
    %c0_21 = arith.constant 0 : index
    %c36 = arith.constant 36 : index
    %18 = vector.load %arg1[%c0_20, %c0_21, %c36] : memref<1x4x512xf32, #tpu.memory_space<vmem>>, vector<1x4x384xf32>
    %19 = vector.shape_cast %18 : vector<1x4x384xf32> to vector<4x384xf32>
    %c24 = arith.constant 24 : index
    %c0_22 = arith.constant 0 : index
    %20 = vector.load %arg7[%c24, %c0_22] : memref<36x384xf32, #tpu.memory_space<vmem>>, vector<4x384xf32>
    tpu.vector_store %arg7[%c24, %c0_22], %19 {strides = array<i32>} : memref<36x384xf32, #tpu.memory_space<vmem>>, vector<4x384xf32>,
    %c0_23 = arith.constant 0 : index
    %c0_24 = arith.constant 0 : index
    %c37 = arith.constant 37 : index
    %21 = vector.load %arg1[%c0_23, %c0_24, %c37] : memref<1x4x512xf32, #tpu.memory_space<vmem>>, vector<1x4x384xf32>
    %22 = vector.shape_cast %21 : vector<1x4x384xf32> to vector<4x384xf32>
    %c28 = arith.constant 28 : index
    %c0_25 = arith.constant 0 : index
    %23 = vector.load %arg7[%c28, %c0_25] : memref<36x384xf32, #tpu.memory_space<vmem>>, vector<4x384xf32>
    tpu.vector_store %arg7[%c28, %c0_25], %22 {strides = array<i32>} : memref<36x384xf32, #tpu.memory_space<vmem>>, vector<4x384xf32>,
    %c0_26 = arith.constant 0 : index
    %c0_27 = arith.constant 0 : index
    %c38 = arith.constant 38 : index
    %24 = vector.load %arg1[%c0_26, %c0_27, %c38] : memref<1x4x512xf32, #tpu.memory_space<vmem>>, vector<1x4x384xf32>
    %25 = vector.shape_cast %24 : vector<1x4x384xf32> to vector<4x384xf32>
    %c32 = arith.constant 32 : index
    %c0_28 = arith.constant 0 : index
    %26 = vector.load %arg7[%c32, %c0_28] : memref<36x384xf32, #tpu.memory_space<vmem>>, vector<4x384xf32>
    tpu.vector_store %arg7[%c32, %c0_28], %25 {strides = array<i32>} : memref<36x384xf32, #tpu.memory_space<vmem>>, vector<4x384xf32>,
    %c0_29 = arith.constant 0 : index
    %c0_30 = arith.constant 0 : index
    %27 = vector.load %arg2[%c0_29, %c0_30] : memref<32x36xf32, #tpu.memory_space<vmem>>, vector<32x36xf32>
    %c0_31 = arith.constant 0 : index
    %c0_32 = arith.constant 0 : index
    %28 = vector.load %arg7[%c0_31, %c0_32] : memref<36x384xf32, #tpu.memory_space<vmem>>, vector<36x384xf32>
    %cst = arith.constant dense<0.000000e+00> : vector<32x384xf32>
    %29 = tpu.matmul %27, %28, %cst {dimension_numbers = #tpu.dot_dimension_numbers<[1], [0], [0], [1], [0, 0, 1, 1], [], []>} : vector<32x36xf32>, vector<36x384xf32>, vector<32x384xf32> -> vector<32x384xf32>
    %c0_33 = arith.constant 0 : index
    %c0_34 = arith.constant 0 : index
    %30 = vector.load %arg3[%c0_33, %c0_34] : memref<32x1xf32, #tpu.memory_space<vmem>>, vector<32x1xf32>
    %31 = vector.broadcast %30 : vector<32x1xf32> to vector<32x384xf32>
    %32 = arith.addf %29, %31 : vector<32x384xf32>
    %cst_35 = arith.constant 0.000000e+00 : f32
    %33 = vector.broadcast %cst_35 : f32 to vector<32x384xf32>
    %34 = arith.maximumf %32, %33 : vector<32x384xf32>
    %c0_36 = arith.constant 0 : index
    %c0_37 = arith.constant 0 : index
    %35 = vector.load %arg4[%c0_36, %c0_37] : memref<16x32xf32, #tpu.memory_space<vmem>>, vector<16x32xf32>
    %cst_38 = arith.constant dense<0.000000e+00> : vector<16x384xf32>
    %36 = tpu.matmul %35, %34, %cst_38 {dimension_numbers = #tpu.dot_dimension_numbers<[1], [0], [0], [1], [0, 0, 1, 1], [], []>} : vector<16x32xf32>, vector<32x384xf32>, vector<16x384xf32> -> vector<16x384xf32>
    %c0_39 = arith.constant 0 : index
    %c0_40 = arith.constant 0 : index
    %37 = vector.load %arg5[%c0_39, %c0_40] : memref<16x1xf32, #tpu.memory_space<vmem>>, vector<16x1xf32>
    %38 = vector.broadcast %37 : vector<16x1xf32> to vector<16x384xf32>
    %39 = arith.addf %36, %38 : vector<16x384xf32>
    %c0_41 = arith.constant 0 : index
    %c0_42 = arith.constant 0 : index
    %c0_43 = arith.constant 0 : index
    %40 = vector.load %arg6[%c0_41, %c0_42, %c0_43] : memref<1x16x384xf32, #tpu.memory_space<vmem>>, vector<1x16x384xf32>
    %41 = vector.shape_cast %40 : vector<1x16x384xf32> to vector<16x384xf32>
    %42 = vector.shape_cast %39 : vector<16x384xf32> to vector<1x16x384xf32>
    tpu.vector_store %arg6[%c0_41, %c0_42, %c0_43], %42 {strides = array<i32>} : memref<1x16x384xf32, #tpu.memory_space<vmem>>, vector<1x16x384xf32>,
    return
  }
  func.func @transform_0(%arg0: i32) -> (i32, i32, i32) {
    %c0_i32 = arith.constant 0 : i32
    %c0_i32_0 = arith.constant 0 : i32
    %c0_i32_1 = arith.constant 0 : i32
    return %arg0, %c0_i32, %c0_i32_0 : i32, i32, i32
  }
  func.func @transform_1(%arg0: i32) -> (i32, i32) {
    %c0_i32 = arith.constant 0 : i32
    %c0_i32_0 = arith.constant 0 : i32
    %c0_i32_1 = arith.constant 0 : i32
    return %c0_i32, %c0_i32_0 : i32, i32
  }
  func.func @transform_2(%arg0: i32) -> (i32, i32) {
    %c0_i32 = arith.constant 0 : i32
    %c0_i32_0 = arith.constant 0 : i32
    %c0_i32_1 = arith.constant 0 : i32
    return %c0_i32, %c0_i32_0 : i32, i32
  }
  func.func @transform_3(%arg0: i32) -> (i32, i32) {
    %c0_i32 = arith.constant 0 : i32
    %c0_i32_0 = arith.constant 0 : i32
    %c0_i32_1 = arith.constant 0 : i32
    return %c0_i32, %c0_i32_0 : i32, i32
  }
  func.func @transform_4(%arg0: i32) -> (i32, i32) {
    %c0_i32 = arith.constant 0 : i32
    %c0_i32_0 = arith.constant 0 : i32
    %c0_i32_1 = arith.constant 0 : i32
    return %c0_i32, %c0_i32_0 : i32, i32
  }
  func.func @transform_5(%arg0: i32) -> (i32, i32, i32) {
    %c0_i32 = arith.constant 0 : i32
    %c0_i32_0 = arith.constant 0 : i32
    %c0_i32_1 = arith.constant 0 : i32
    return %arg0, %c0_i32, %c0_i32_0 : i32, i32, i32
  }
}

</mosaic_0001>

<llo_original>
// kernel: mtl_shared_enc_forward.1
$region0: #{mtl_shared_enc_forward.1}
  #allocation0 [shape = 'u32[]', space=smem, size = 0x4, offset = 0x4, fixed_abs, tag = 'smem constant byte address 0x4 - core index']
  #allocation1 [shape = 'u32[144,128]{1,0:T(1,128)}', space=vmem, size = 0x12000, scoped, tag = 'internal scratch']
  #allocation2 [shape = 'f32[36,384]{1,0:T(8,128)}', space=vmem, size = 0xf000, scoped, tag = 'scratch operand']
  %s0 = inlined_call_operand.vmem [shape: f32[2,4,512], index: 0, kind: input, shape index: {}]
  %s1 = inlined_call_operand.vmem [shape: f32[32,36], index: 1, kind: input, shape index: {}]
  %s2 = inlined_call_operand.vmem [shape: f32[32,1], index: 2, kind: input, shape index: {}]
  %s3 = inlined_call_operand.vmem [shape: f32[16,32], index: 3, kind: input, shape index: {}]
  %s4 = inlined_call_operand.vmem [shape: f32[16,1], index: 4, kind: input, shape index: {}]
  %s5 = inlined_call_operand.vmem [shape: f32[2,16,384], index: 5, kind: output, shape index: {}]
  %s6 = sld [smem:[#allocation0]]
  $region53: #{mtl_shared_enc_forward.1} parent=0
    _
  %s8 = ssub.s32 1, %s6
  %s9 = scalar_select 0, %s8, %s6
  loop: start=0, step=1, limit=4
  $region2: #{mtl_shared_enc_forward.1} parent=0 // loop_pre_header
    _
  $region3: #{mtl_shared_enc_forward.1} parent=0 // loop_header
    %s11 = sphi 0, %s15
    %p12 = scmp.ge.s32.totalorder %s11, 4
    %s21 = sphi 0, %s23
    %s24 = sphi 0, %s21
    %s25 = sphi 0, %s24
    %s41 = sphi 0, %s25
    %s45 = sphi 0, %s45
    %s47 = sphi 0, %s45
    %s48 = sphi 0, %s47
    %s62 = sphi 0, %s48
    %s66 = sphi 0, %s66
    %s68 = sphi 0, %s66
    %s69 = sphi 0, %s68
    %s83 = sphi 0, %s69
    %s87 = sphi 0, %s87
    %s89 = sphi 0, %s87
    %s90 = sphi 0, %s89
    %s104 = sphi 0, %s90
    %s108 = sphi 0, %s108
    %s110 = sphi 0, %s108
    %s111 = sphi 0, %s110
    %s125 = sphi 0, %s111
    %s131 = sphi 0, %s133
    %s134 = sphi 0, %s131
    %s135 = sphi 0, %s134
    %s151 = sphi 0, %s135
  $region4: #{mtl_shared_enc_forward.1} parent=0 // loop_header_branch
    %14 = sbr.rel (%p12) target = $region8
  $region5: #{mtl_shared_enc_forward.1} parent=0 // loop_body
    %s16 = ssub.s32 %s11, 1
    %s17 = ssub.s32 %s11, 2
    %s18 = sadd.s32 %s11, 1
    %s19 = ssub.s32 %s11, %s18
    %p20 = scmp.eq.s32.totalorder %s19, 0
    %s22 = sadd.s32 %s21, 1
    %s23 = scalar_select %p20, %s21, %s22
    %p26 = pneg %p20
    %p27 = scmp.eq.s32.totalorder %s11, 1
    %p28 = por %p26, %p27
    %p29 = scmp.ne.s32.totalorder %s21, %s24
    %p30 = scmp.eq.s32.totalorder %s11, 0
    %p31 = por %p29, %p30
    %p32 = scmp.ne.s32.totalorder %s21, %s24
    %p33 = scmp.eq.s32.totalorder %s16, 1
    %p34 = por %p32, %p33
    %p35 = scmp.ne.s32.totalorder %s24, %s25
    %p36 = scmp.eq.s32.totalorder %s16, 0
    %p37 = por %p35, %p36
    %p38 = scmp.ne.s32.totalorder %s24, %s25
    %p39 = scmp.eq.s32.totalorder %s17, 1
    %p40 = por %p38, %p39
    %p42 = scmp.ne.s32.totalorder %s25, %s41
    %p43 = scmp.eq.s32.totalorder %s17, 0
    %p44 = por %p42, %p43
    %s46 = sadd.s32 %s45, 1
    %p49 = scmp.eq.s32.totalorder %s11, 1
    %p50 = scmp.ne.s32.totalorder %s45, %s47
    %p51 = scmp.eq.s32.totalorder %s11, 0
    %p52 = por %p50, %p51
    %p53 = scmp.ne.s32.totalorder %s45, %s47
    %p54 = scmp.eq.s32.totalorder %s16, 1
    %p55 = por %p53, %p54
    %p56 = scmp.ne.s32.totalorder %s47, %s48
    %p57 = scmp.eq.s32.totalorder %s16, 0
    %p58 = por %p56, %p57
    %p59 = scmp.ne.s32.totalorder %s47, %s48
    %p60 = scmp.eq.s32.totalorder %s17, 1
    %p61 = por %p59, %p60
    %p63 = scmp.ne.s32.totalorder %s48, %s62
    %p64 = scmp.eq.s32.totalorder %s17, 0
    %p65 = por %p63, %p64
    %s67 = sadd.s32 %s66, 1
    %p70 = scmp.eq.s32.totalorder %s11, 1
    %p71 = scmp.ne.s32.totalorder %s66, %s68
    %p72 = scmp.eq.s32.totalorder %s11, 0
    %p73 = por %p71, %p72
    %p74 = scmp.ne.s32.totalorder %s66, %s68
    %p75 = scmp.eq.s32.totalorder %s16, 1
    %p76 = por %p74, %p75
    %p77 = scmp.ne.s32.totalorder %s68, %s69
    %p78 = scmp.eq.s32.totalorder %s16, 0
    %p79 = por %p77, %p78
    %p80 = scmp.ne.s32.totalorder %s68, %s69
    %p81 = scmp.eq.s32.totalorder %s17, 1
    %p82 = por %p80, %p81
    %p84 = scmp.ne.s32.totalorder %s69, %s83
    %p85 = scmp.eq.s32.totalorder %s17, 0
    %p86 = por %p84, %p85
    %s88 = sadd.s32 %s87, 1
    %p91 = scmp.eq.s32.totalorder %s11, 1
    %p92 = scmp.ne.s32.totalorder %s87, %s89
    %p93 = scmp.eq.s32.totalorder %s11, 0
    %p94 = por %p92, %p93
    %p95 = scmp.ne.s32.totalorder %s87, %s89
    %p96 = scmp.eq.s32.totalorder %s16, 1
    %p97 = por %p95, %p96
    %p98 = scmp.ne.s32.totalorder %s89, %s90
    %p99 = scmp.eq.s32.totalorder %s16, 0
    %p100 = por %p98, %p99
    %p101 = scmp.ne.s32.totalorder %s89, %s90
    %p102 = scmp.eq.s32.totalorder %s17, 1
    %p103 = por %p101, %p102
    %p105 = scmp.ne.s32.totalorder %s90, %s104
    %p106 = scmp.eq.s32.totalorder %s17, 0
    %p107 = por %p105, %p106
    %s109 = sadd.s32 %s108, 1
    %p112 = scmp.eq.s32.totalorder %s11, 1
    %p113 = scmp.ne.s32.totalorder %s108, %s110
    %p114 = scmp.eq.s32.totalorder %s11, 0
    %p115 = por %p113, %p114
    %p116 = scmp.ne.s32.totalorder %s108, %s110
    %p117 = scmp.eq.s32.totalorder %s16, 1
    %p118 = por %p116, %p117
    %p119 = scmp.ne.s32.totalorder %s110, %s111
    %p120 = scmp.eq.s32.totalorder %s16, 0
    %p121 = por %p119, %p120
    %p122 = scmp.ne.s32.totalorder %s110, %s111
    %p123 = scmp.eq.s32.totalorder %s17, 1
    %p124 = por %p122, %p123
    %p126 = scmp.ne.s32.totalorder %s111, %s125
    %p127 = scmp.eq.s32.totalorder %s17, 0
    %p128 = por %p126, %p127
    %s129 = ssub.s32 %s11, %s18
    %p130 = scmp.eq.s32.totalorder %s129, 0
    %s132 = sadd.s32 %s131, 1
    %s133 = scalar_select %p130, %s131, %s132
    %p136 = pneg %p130
    %p137 = scmp.eq.s32.totalorder %s11, 1
    %p138 = por %p136, %p137
    %p139 = scmp.ne.s32.totalorder %s131, %s134
    %p140 = scmp.eq.s32.totalorder %s11, 0
    %p141 = por %p139, %p140
    %p142 = scmp.ne.s32.totalorder %s131, %s134
    %p143 = scmp.eq.s32.totalorder %s16, 1
    %p144 = por %p142, %p143
    %p145 = scmp.ne.s32.totalorder %s134, %s135
    %p146 = scmp.eq.s32.totalorder %s16, 0
    %p147 = por %p145, %p146
    %p148 = scmp.ne.s32.totalorder %s134, %s135
    %p149 = scmp.eq.s32.totalorder %s17, 1
    %p150 = por %p148, %p149
    %p152 = scmp.ne.s32.totalorder %s135, %s151
    %p153 = scmp.eq.s32.totalorder %s17, 0
    %p154 = por %p152, %p153
    %p155 = scmp.le.s32.totalorder 1, %s11
    %p156 = scmp.lt.s32.totalorder %s11, 3
    %p157 = pnand %p155, %p156
    %p158 = pneg %p157
    // Predicated region
    $region9: #{mtl_shared_enc_forward.1} parent=5 // pred_check
      _
    $region10: #{mtl_shared_enc_forward.1} parent=5 // pred_check_branch
      %160 = sbr.rel (%p157) target = $region12
    $region11: #{mtl_shared_enc_forward.1} parent=5 // pred_region
      %s161 = ssub.s32 %s11, 1
      // Predicated region
      $region13: #{mtl_shared_enc_forward.1} parent=11 // pred_check
        %p162 = pneg %p58
      $region14: #{mtl_shared_enc_forward.1} parent=11 // pred_check_branch
        %164 = sbr.rel (%p162) target = $region16
      $region15: #{mtl_shared_enc_forward.1} parent=11 // pred_region
        _
      $region16: #{mtl_shared_enc_forward.1} parent=11 // pred_fallthru
        _
      // Predicated region
      $region17: #{mtl_shared_enc_forward.1} parent=11 // pred_check
        %p165 = pneg %p79
      $region18: #{mtl_shared_enc_forward.1} parent=11 // pred_check_branch
        %167 = sbr.rel (%p165) target = $region20
      $region19: #{mtl_shared_enc_forward.1} parent=11 // pred_region
        _
      $region20: #{mtl_shared_enc_forward.1} parent=11 // pred_fallthru
        _
      // Predicated region
      $region21: #{mtl_shared_enc_forward.1} parent=11 // pred_check
        %p168 = pneg %p100
      $region22: #{mtl_shared_enc_forward.1} parent=11 // pred_check_branch
        %170 = sbr.rel (%p168) target = $region24
      $region23: #{mtl_shared_enc_forward.1} parent=11 // pred_region
        _
      $region24: #{mtl_shared_enc_forward.1} parent=11 // pred_fallthru
        _
      // Predicated region
      $region25: #{mtl_shared_enc_forward.1} parent=11 // pred_check
        %p171 = pneg %p121
      $region26: #{mtl_shared_enc_forward.1} parent=11 // pred_check_branch
        %173 = sbr.rel (%p171) target = $region28
      $region27: #{mtl_shared_enc_forward.1} parent=11 // pred_region
        _
      $region28: #{mtl_shared_enc_forward.1} parent=11 // pred_fallthru
        _
    $region12: #{mtl_shared_enc_forward.1} parent=5 // pred_fallthru
      _
    %p174 = scmp.lt.s32.totalorder %s11, 2
    // Predicated region
    $region29: #{mtl_shared_enc_forward.1} parent=5 // pred_check
      %p175 = pneg %p174
    $region30: #{mtl_shared_enc_forward.1} parent=5 // pred_check_branch
      %177 = sbr.rel (%p175) target = $region32
    $region31: #{mtl_shared_enc_forward.1} parent=5 // pred_region
      // Predicated region
      $region33: #{mtl_shared_enc_forward.1} parent=31 // pred_check
        %p178 = pneg %p31
      $region34: #{mtl_shared_enc_forward.1} parent=31 // pred_check_branch
        %180 = sbr.rel (%p178) target = $region36
      $region35: #{mtl_shared_enc_forward.1} parent=31 // pred_region
        %p181 = scmp.lt.s32.totalorder %s11, 1
        %s182 = scalar_select %p181, %s11, 1
        %s183 = smul.addr %s182, 4
        %s184 = smul.addr %s183, 4
        %s185 = scalar_lea.vmem %s0, %s184
      $region36: #{mtl_shared_enc_forward.1} parent=31 // pred_fallthru
        _
    $region32: #{mtl_shared_enc_forward.1} parent=5 // pred_fallthru
      _
    %p186 = scmp.le.s32.totalorder 1, %s11
    %p187 = scmp.lt.s32.totalorder %s11, 3
    %p188 = pnand %p186, %p187
    %p189 = pneg %p188
    // Predicated region
    $region37: #{mtl_shared_enc_forward.1} parent=5 // pred_check
      _
    $region38: #{mtl_shared_enc_forward.1} parent=5 // pred_check_branch
      %191 = sbr.rel (%p188) target = $region40
    $region39: #{mtl_shared_enc_forward.1} parent=5 // pred_region
      %s192 = ssub.s32 %s11, 1
      %p193 = scmp.lt.s32.totalorder %s16, 1
      %s194 = scalar_select %p193, %s16, 1
      %s195 = smul.addr %s194, 4
      %s196 = smul.addr %s195, 4
      %s197 = scalar_lea.vmem %s0, %s196
      %p198 = pneg %p37
      %p199 = pneg %p34
      %p200 = pneg %p58
      %p201 = pneg %p55
      %p202 = pneg %p79
      %p203 = pneg %p76
      %p204 = pneg %p100
      %p205 = pneg %p97
      %p206 = pneg %p121
      %p207 = pneg %p118
      %p208 = pneg %p147
      %p209 = pneg %p144
      %p210 = scmp.lt.s32.totalorder %s16, 1
      %s211 = scalar_select %p210, %s16, 1
      %s212 = smul.addr %s211, 6
      %s213 = smul.addr %s212, 8
      %s214 = scalar_lea.vmem %s5, %s213
      %p215 = scmp.lt.s32.totalorder %s16, 1
      %s216 = scalar_select %p215, %s16, 1
      %s217 = smul.addr %s216, 4
      %s218 = smul.addr %s217, 4
      %s219 = scalar_lea.vmem %s0, %s218
      %p220 = scmp.lt.s32.totalorder %s16, 1
      %s221 = scalar_select %p220, %s16, 1
      %s222 = smul.addr %s221, 6
      %s223 = smul.addr %s222, 8
      %s224 = scalar_lea.vmem %s5, %s223
      %v225 = vld [vmem:[%s219] sm:$0xff]
      %v226 = vld [vmem:[%s219 + $0x8] sm:$0xf]
      %v228 = vcombine.high %v225, %v225
      %230 = vst [vmem:[#allocation2] sm:$0xf] %v225
      %231 = vst [vmem:[#allocation2 + $0x8] sm:$0xf] %v228
      %232 = vst [vmem:[#allocation2 + $0x10] sm:$0xf] %v226
      %v233 = vld [vmem:[%s219] sm:$0xff]
      %v234 = vld [vmem:[%s219 + $0x8] sm:$0xff]
      %v237 = vcombine.low %v233, %v233
      %v238 = vcombine.low %v234, %v234
      %239 = vrot.lane.b32.xlu0 %v237, 127
      %v240 = vpop.permute.xlu0 %239
      %241 = vrot.lane.b32.xlu0 %v233, 127
      %v242 = vpop.permute.xlu0 %241
      %243 = vrot.lane.b32.xlu0 %v238, 127
      %v244 = vpop.permute.xlu0 %243
      %245 = vrot.lane.b32.xlu0 %v234, 127
      %v246 = vpop.permute.xlu0 %245
      %vm247 = vcmask 1039360
      %v248 = vsel %vm247, %v240, %v242
      %v249 = vsel %vm247, %v242, %v244
      %v250 = vsel %vm247, %v244, %v246
      %254 = vst [vmem:[#allocation2] sm:$0xf0] %v248
      %255 = vst [vmem:[#allocation2 + $0x8] sm:$0xf0] %v249
      %256 = vst [vmem:[#allocation2 + $0x10] sm:$0xf0] %v250
      %v257 = vld [vmem:[%s219] sm:$0xff]
      %v258 = vld [vmem:[%s219 + $0x8] sm:$0xff]
      %v261 = vcombine.high %v257, %v257
      %v262 = vcombine.high %v258, %v258
      %263 = vrot.lane.b32.xlu0 %v257, 126
      %v264 = vpop.permute.xlu0 %263
      %265 = vrot.lane.b32.xlu0 %v261, 126
      %v266 = vpop.permute.xlu0 %265
      %267 = vrot.lane.b32.xlu0 %v258, 126
      %v268 = vpop.permute.xlu0 %267
      %269 = vrot.lane.b32.xlu0 %v262, 126
      %v270 = vpop.permute.xlu0 %269
      %vm271 = vcmask 1031168
      %v272 = vsel %vm271, %v264, %v266
      %v273 = vsel %vm271, %v266, %v268
      %v274 = vsel %vm271, %v268, %v270
      %278 = vst [vmem:[#allocation2 + $0x18] sm:$0xf] %v272
      %279 = vst [vmem:[#allocation2 + $0x20] sm:$0xf] %v273
      %280 = vst [vmem:[#allocation2 + $0x28] sm:$0xf] %v274
      %v281 = vld [vmem:[%s219] sm:$0xff]
      %v282 = vld [vmem:[%s219 + $0x8] sm:$0xff]
      %v285 = vcombine.low %v281, %v281
      %v286 = vcombine.low %v282, %v282
      %287 = vrot.lane.b32.xlu0 %v285, 110
      %v288 = vpop.permute.xlu0 %287
      %289 = vrot.lane.b32.xlu0 %v281, 110
      %v290 = vpop.permute.xlu0 %289
      %291 = vrot.lane.b32.xlu0 %v286, 110
      %v292 = vpop.permute.xlu0 %291
      %293 = vrot.lane.b32.xlu0 %v282, 110
      %v294 = vpop.permute.xlu0 %293
      %vm295 = vcmask 900096
      %v296 = vsel %vm295, %v288, %v290
      %v297 = vsel %vm295, %v290, %v292
      %v298 = vsel %vm295, %v292, %v294
      %302 = vst [vmem:[#allocation2 + $0x18] sm:$0xf0] %v296
      %303 = vst [vmem:[#allocation2 + $0x20] sm:$0xf0] %v297
      %304 = vst [vmem:[#allocation2 + $0x28] sm:$0xf0] %v298
      %v305 = vld [vmem:[%s219] sm:$0xff]
      %v306 = vld [vmem:[%s219 + $0x8] sm:$0xff]
      %v309 = vcombine.high %v305, %v305
      %v310 = vcombine.high %v306, %v306
      %311 = vrot.lane.b32.xlu0 %v305, 109
      %v312 = vpop.permute.xlu0 %311
      %313 = vrot.lane.b32.xlu0 %v309, 109
      %v314 = vpop.permute.xlu0 %313
      %315 = vrot.lane.b32.xlu0 %v306, 109
      %v316 = vpop.permute.xlu0 %315
      %317 = vrot.lane.b32.xlu0 %v310, 109
      %v318 = vpop.permute.xlu0 %317
      %vm319 = vcmask 891904
      %v320 = vsel %vm319, %v312, %v314
      %v321 = vsel %vm319, %v314, %v316
      %v322 = vsel %vm319, %v316, %v318
      %326 = vst [vmem:[#allocation2 + $0x30] sm:$0xf] %v320
      %327 = vst [vmem:[#allocation2 + $0x38] sm:$0xf] %v321
      %328 = vst [vmem:[#allocation2 + $0x40] sm:$0xf] %v322
      %v329 = vld [vmem:[%s219] sm:$0xff]
      %v330 = vld [vmem:[%s219 + $0x8] sm:$0xff]
      %v333 = vcombine.low %v329, %v329
      %v334 = vcombine.low %v330, %v330
      %335 = vrot.lane.b32.xlu0 %v333, 108
      %v336 = vpop.permute.xlu0 %335
      %337 = vrot.lane.b32.xlu0 %v329, 108
      %v338 = vpop.permute.xlu0 %337
      %339 = vrot.lane.b32.xlu0 %v334, 108
      %v340 = vpop.permute.xlu0 %339
      %341 = vrot.lane.b32.xlu0 %v330, 108
      %v342 = vpop.permute.xlu0 %341
      %vm343 = vcmask 883712
      %v344 = vsel %vm343, %v336, %v338
      %v345 = vsel %vm343, %v338, %v340
      %v346 = vsel %vm343, %v340, %v342
      %350 = vst [vmem:[#allocation2 + $0x30] sm:$0xf0] %v344
      %351 = vst [vmem:[#allocation2 + $0x38] sm:$0xf0] %v345
      %352 = vst [vmem:[#allocation2 + $0x40] sm:$0xf0] %v346
      %v353 = vld [vmem:[%s219] sm:$0xff]
      %v354 = vld [vmem:[%s219 + $0x8] sm:$0xff]
      %v357 = vcombine.high %v353, %v353
      %v358 = vcombine.high %v354, %v354
      %359 = vrot.lane.b32.xlu0 %v353, 92
      %v360 = vpop.permute.xlu0 %359
      %361 = vrot.lane.b32.xlu0 %v357, 92
      %v362 = vpop.permute.xlu0 %361
      %363 = vrot.lane.b32.xlu0 %v354, 92
      %v364 = vpop.permute.xlu0 %363
      %365 = vrot.lane.b32.xlu0 %v358, 92
      %v366 = vpop.permute.xlu0 %365
      %vm367 = vcmask 752640
      %v368 = vsel %vm367, %v360, %v362
      %v369 = vsel %vm367, %v362, %v364
      %v370 = vsel %vm367, %v364, %v366
      %374 = vst [vmem:[#allocation2 + $0x48] sm:$0xf] %v368
      %375 = vst [vmem:[#allocation2 + $0x50] sm:$0xf] %v369
      %376 = vst [vmem:[#allocation2 + $0x58] sm:$0xf] %v370
      %v377 = vld [vmem:[%s219] sm:$0xff]
      %v378 = vld [vmem:[%s219 + $0x8] sm:$0xff]
      %v381 = vcombine.low %v377, %v377
      %v382 = vcombine.low %v378, %v378
      %383 = vrot.lane.b32.xlu0 %v381, 91
      %v384 = vpop.permute.xlu0 %383
      %385 = vrot.lane.b32.xlu0 %v377, 91
      %v386 = vpop.permute.xlu0 %385
      %387 = vrot.lane.b32.xlu0 %v382, 91
      %v388 = vpop.permute.xlu0 %387
      %389 = vrot.lane.b32.xlu0 %v378, 91
      %v390 = vpop.permute.xlu0 %389
      %vm391 = vcmask 744448
      %v392 = vsel %vm391, %v384, %v386
      %v393 = vsel %vm391, %v386, %v388
      %v394 = vsel %vm391, %v388, %v390
      %398 = vst [vmem:[#allocation2 + $0x48] sm:$0xf0] %v392
      %399 = vst [vmem:[#allocation2 + $0x50] sm:$0xf0] %v393
      %400 = vst [vmem:[#allocation2 + $0x58] sm:$0xf0] %v394
      %v401 = vld [vmem:[%s219] sm:$0xff]
      %v402 = vld [vmem:[%s219 + $0x8] sm:$0xff]
      %v405 = vcombine.high %v401, %v401
      %v406 = vcombine.high %v402, %v402
      %407 = vrot.lane.b32.xlu0 %v401, 90
      %v408 = vpop.permute.xlu0 %407
      %409 = vrot.lane.b32.xlu0 %v405, 90
      %v410 = vpop.permute.xlu0 %409
      %411 = vrot.lane.b32.xlu0 %v402, 90
      %v412 = vpop.permute.xlu0 %411
      %413 = vrot.lane.b32.xlu0 %v406, 90
      %v414 = vpop.permute.xlu0 %413
      %vm415 = vcmask 736256
      %v416 = vsel %vm415, %v408, %v410
      %v417 = vsel %vm415, %v410, %v412
      %v418 = vsel %vm415, %v412, %v414
      %422 = vst [vmem:[#allocation2 + $0x60] sm:$0xf] %v416
      %423 = vst [vmem:[#allocation2 + $0x68] sm:$0xf] %v417
      %424 = vst [vmem:[#allocation2 + $0x70] sm:$0xf] %v418
      %v425 = vld [vmem:[%s1] sm:$0xff]
      %v426 = vld [vmem:[%s1 + $0x8] sm:$0xff]
      %v427 = vld [vmem:[%s1 + $0x10] sm:$0xff]
      %v428 = vld [vmem:[%s1 + $0x18] sm:$0xff]
      %v429 = vld [vmem:[#allocation2] sm:$0xff]
      %v430 = vld [vmem:[#allocation2 + $0x8] sm:$0xff]
      %v431 = vld [vmem:[#allocation2 + $0x10] sm:$0xff]
      %v432 = vld [vmem:[#allocation2 + $0x18] sm:$0xff]
      %v433 = vld [vmem:[#allocation2 + $0x20] sm:$0xff]
      %v434 = vld [vmem:[#allocation2 + $0x28] sm:$0xff]
      %v435 = vld [vmem:[#allocation2 + $0x30] sm:$0xff]
      %v436 = vld [vmem:[#allocation2 + $0x38] sm:$0xff]
      %v437 = vld [vmem:[#allocation2 + $0x40] sm:$0xff]
      %v438 = vld [vmem:[#allocation2 + $0x48] sm:$0xff]
      %v439 = vld [vmem:[#allocation2 + $0x50] sm:$0xff]
      %v440 = vld [vmem:[#allocation2 + $0x58] sm:$0xff]
      %v441 = vld [vmem:[#allocation2 + $0x60] sm:$0xf]
      %v442 = vld [vmem:[#allocation2 + $0x68] sm:$0xf]
      %v443 = vld [vmem:[#allocation2 + $0x70] sm:$0xf]
      %v444 = vld [vmem:[%s2] sm:$0xff]
      %v445 = vld [vmem:[%s2 + $0x8] sm:$0xff]
      %v446 = vld [vmem:[%s2 + $0x10] sm:$0xff]
      %v447 = vld [vmem:[%s2 + $0x18] sm:$0xff]
      %449 = vset.pattern.permute.xlu0 0
      %450 = vperm.xlu0 %449, %v444
      %v451 = vpop.permute.xlu0 %450
      %454 = vset.pattern.permute.xlu0 0
      %455 = vperm.xlu0 %454, %v445
      %v456 = vpop.permute.xlu0 %455
      %459 = vset.pattern.permute.xlu0 0
      %460 = vperm.xlu0 %459, %v446
      %v461 = vpop.permute.xlu0 %460
      %464 = vset.pattern.permute.xlu0 0
      %465 = vperm.xlu0 %464, %v447
      %v466 = vpop.permute.xlu0 %465
      %vm468 = vcmask 293888
      %v470 = vsel %vm468, %v425, 0
      %v473 = vsel %vm468, %v426, 0
      %v476 = vsel %vm468, %v427, 0
      %v479 = vsel %vm468, %v428, 0
      %vm481 = vcmask 1043456
      %v483 = vsel %vm481, %v441, 0
      %v486 = vsel %vm481, %v442, 0
      %v489 = vsel %vm481, %v443, 0
      %491 = vmatprep.subr.mxu0 %v430
      %492 = vmatpush1.msra.mxu0 %v429
      %493 = vmatprep.subr.mxu0 %v433
      %494 = vmatpush1.msra.mxu0 %v432
      %495 = vmatprep.subr.mxu0 %v436
      %496 = vmatpush1.msra.mxu0 %v435
      %497 = vmatprep.subr.mxu0 %v439
      %498 = vmatpush1.msra.mxu0 %v438
      %499 = vmatprep.subr.mxu0 %v486
      %500 = vmatpush1.msra.mxu0 %v483
      %501 = vmatprep.subr.mxu0 0.0
      %502 = vmatpush1.msra.mxu0 0.0
      %503 = vmatprep.subr.mxu0 0.0
      %504 = vmatpush1.msra.mxu0 0.0
      %505 = vmatprep.subr.mxu0 0.0
      %506 = vmatpush1.msra.mxu0 0.0
      %507 = vmatprep.subr.mxu0 0.0
      %508 = vmatpush1.msra.mxu0 0.0
      %509 = vmatprep.subr.mxu0 0.0
      %510 = vmatpush1.msra.mxu0 0.0
      %511 = vmatprep.subr.mxu0 0.0
      %512 = vmatpush1.msra.mxu0 0.0
      %513 = vmatprep.subr.mxu0 0.0
      %514 = vmatpush1.msra.mxu0 0.0
      %515 = vmatprep.subr.mxu0 0.0
      %516 = vmatpush1.msra.mxu0 0.0
      %517 = vmatprep.subr.mxu0 0.0
      %518 = vmatpush1.msra.mxu0 0.0
      %519 = vmatprep.subr.mxu0 0.0
      %520 = vmatpush1.msra.mxu0 0.0
      %521 = vmatprep.subr.mxu0 0.0
      %522 = vmatpush1.msra.mxu0 0.0
      %523 = vmatprep.subr.mxu0 0.0
      %524 = vmatpush1.msra.mxu0 0.0
      %525 = vmatprep.subr.mxu0 0.0
      %526 = vmatpush1.msra.mxu0 0.0
      %527 = vmatprep.subr.mxu0 0.0
      %528 = vmatpush1.msra.mxu0 0.0
      %529 = vmatprep.subr.mxu0 0.0
      %530 = vmatpush1.msra.mxu0 0.0
      %531 = vmatprep.subr.mxu0 0.0
      %532 = vmatpush1.msra.mxu0 0.0
      %533 = vmatprep.subr.mxu0 0.0
      %534 = vmatpush1.msra.mxu0 0.0
      %535 = vmatprep.subr.mxu0 0.0
      %536 = vmatpush1.msra.mxu0 0.0
      %537 = vmatprep.subr.mxu0 0.0
      %538 = vmatpush1.msra.mxu0 0.0
      %539 = vmatprep.subr.mxu0 0.0
      %540 = vmatpush1.msra.mxu0 0.0
      %541 = vmatprep.subr.mxu0 0.0
      %542 = vmatpush1.msra.mxu0 0.0
      %543 = vmatprep.subr.mxu0 0.0
      %544 = vmatpush1.msra.mxu0 0.0
      %545 = vmatprep.subr.mxu0 0.0
      %546 = vmatpush1.msra.mxu0 0.0
      %547 = vmatprep.subr.mxu0 0.0
      %548 = vmatpush1.msra.mxu0 0.0
      %549 = vmatprep.subr.mxu0 0.0
      %550 = vmatpush1.msra.mxu0 0.0
      %551 = vmatprep.subr.mxu0 0.0
      %552 = vmatpush1.msra.mxu0 0.0
      %553 = vmatprep.subr.mxu0 0.0
      %554 = vmatpush1.msra.mxu0 0.0
      %555 = vmatprep.mubr.f32.mxu0 0.0
      %556 = vmatmul.mubr.f32.gmra.mrb[0].mxu0 %v470
      %v557 = vpop.f32.mrb[0].mxu0
      %v558 = vadd.f32 %v451, %v557
      %v559 = vpop.f32.mrb[0].mxu0
      %v560 = vadd.f32 %v451, %v559
      %561 = vmatprep.mubr.f32.mxu0 0.0
      %562 = vmatmul.mubr.f32.gmra.mrb[0].mxu0 %v473
      %v563 = vpop.f32.mrb[0].mxu0
      %v564 = vadd.f32 %v456, %v563
      %v565 = vpop.f32.mrb[0].mxu0
      %v566 = vadd.f32 %v456, %v565
      %567 = vmatprep.mubr.f32.mxu0 0.0
      %568 = vmatmul.mubr.f32.gmra.mrb[0].mxu0 %v476
      %v569 = vpop.f32.mrb[0].mxu0
      %v570 = vadd.f32 %v461, %v569
      %v571 = vpop.f32.mrb[0].mxu0
      %v572 = vadd.f32 %v461, %v571
      %573 = vmatprep.mubr.f32.mxu0 0.0
      %574 = vmatmul.mubr.f32.gmra.mrb[0].mxu0 %v479
      %v575 = vpop.f32.mrb[0].mxu0
      %v576 = vadd.f32 %v466, %v575
      %v577 = vpop.f32.mrb[0].mxu0
      %v578 = vadd.f32 %v466, %v577
      %579 = vdwg.mxu0
      %580 = vmatprep.subr.mxu0 0.0
      %581 = vmatpush1.msra.mxu0 %v431
      %582 = vmatprep.subr.mxu0 0.0
      %583 = vmatpush1.msra.mxu0 %v434
      %584 = vmatprep.subr.mxu0 0.0
      %585 = vmatpush1.msra.mxu0 %v437
      %586 = vmatprep.subr.mxu0 0.0
      %587 = vmatpush1.msra.mxu0 %v440
      %588 = vmatprep.subr.mxu0 0.0
      %589 = vmatpush1.msra.mxu0 %v489
      %590 = vmatprep.subr.mxu0 0.0
      %591 = vmatpush1.msra.mxu0 0.0
      %592 = vmatprep.subr.mxu0 0.0
      %593 = vmatpush1.msra.mxu0 0.0
      %594 = vmatprep.subr.mxu0 0.0
      %595 = vmatpush1.msra.mxu0 0.0
      %596 = vmatprep.subr.mxu0 0.0
      %597 = vmatpush1.msra.mxu0 0.0
      %598 = vmatprep.subr.mxu0 0.0
      %599 = vmatpush1.msra.mxu0 0.0
      %600 = vmatprep.subr.mxu0 0.0
      %601 = vmatpush1.msra.mxu0 0.0
      %602 = vmatprep.subr.mxu0 0.0
      %603 = vmatpush1.msra.mxu0 0.0
      %604 = vmatprep.subr.mxu0 0.0
      %605 = vmatpush1.msra.mxu0 0.0
      %606 = vmatprep.subr.mxu0 0.0
      %607 = vmatpush1.msra.mxu0 0.0
      %608 = vmatprep.subr.mxu0 0.0
      %609 = vmatpush1.msra.mxu0 0.0
      %610 = vmatprep.subr.mxu0 0.0
      %611 = vmatpush1.msra.mxu0 0.0
      %612 = vmatprep.subr.mxu0 0.0
      %613 = vmatpush1.msra.mxu0 0.0
      %614 = vmatprep.subr.mxu0 0.0
      %615 = vmatpush1.msra.mxu0 0.0
      %616 = vmatprep.subr.mxu0 0.0
      %617 = vmatpush1.msra.mxu0 0.0
      %618 = vmatprep.subr.mxu0 0.0
      %619 = vmatpush1.msra.mxu0 0.0
      %620 = vmatprep.subr.mxu0 0.0
      %621 = vmatpush1.msra.mxu0 0.0
      %622 = vmatprep.subr.mxu0 0.0
      %623 = vmatpush1.msra.mxu0 0.0
      %624 = vmatprep.subr.mxu0 0.0
      %625 = vmatpush1.msra.mxu0 0.0
      %626 = vmatprep.subr.mxu0 0.0
      %627 = vmatpush1.msra.mxu0 0.0
      %628 = vmatprep.subr.mxu0 0.0
      %629 = vmatpush1.msra.mxu0 0.0
      %630 = vmatprep.subr.mxu0 0.0
      %631 = vmatpush1.msra.mxu0 0.0
      %632 = vmatprep.subr.mxu0 0.0
      %633 = vmatpush1.msra.mxu0 0.0
      %634 = vmatprep.subr.mxu0 0.0
      %635 = vmatpush1.msra.mxu0 0.0
      %636 = vmatprep.subr.mxu0 0.0
      %637 = vmatpush1.msra.mxu0 0.0
      %638 = vmatprep.subr.mxu0 0.0
      %639 = vmatpush1.msra.mxu0 0.0
      %640 = vmatprep.subr.mxu0 0.0
      %641 = vmatpush1.msra.mxu0 0.0
      %642 = vmatprep.subr.mxu0 0.0
      %643 = vmatpush1.msra.mxu0 0.0
      %644 = vmatprep.mubr.f32.mxu0 0.0
      %645 = vmatmul.mubr.f32.gmra.mrb[0].mxu0 %v470
      %v646 = vpop.f32.mrb[0].mxu0
      %v647 = vadd.f32 %v451, %v646
      %v648 = vpop.f32.mrb[0].mxu0
      %649 = vmatprep.mubr.f32.mxu0 0.0
      %650 = vmatmul.mubr.f32.gmra.mrb[0].mxu0 %v473
      %v651 = vpop.f32.mrb[0].mxu0
      %v652 = vadd.f32 %v456, %v651
      %v653 = vpop.f32.mrb[0].mxu0
      %654 = vmatprep.mubr.f32.mxu0 0.0
      %655 = vmatmul.mubr.f32.gmra.mrb[0].mxu0 %v476
      %v656 = vpop.f32.mrb[0].mxu0
      %v657 = vadd.f32 %v461, %v656
      %v658 = vpop.f32.mrb[0].mxu0
      %659 = vmatprep.mubr.f32.mxu0 0.0
      %660 = vmatmul.mubr.f32.gmra.mrb[0].mxu0 %v479
      %v661 = vpop.f32.mrb[0].mxu0
      %v662 = vadd.f32 %v466, %v661
      %v663 = vpop.f32.mrb[0].mxu0
      %664 = vdwg.mxu0
      %v665 = vmax.f32 %v558, 0.0
      %v666 = vmax.f32 %v560, 0.0
      %v667 = vmax.f32 %v647, 0.0
      %v668 = vmax.f32 %v564, 0.0
      %v669 = vmax.f32 %v566, 0.0
      %v670 = vmax.f32 %v652, 0.0
      %v671 = vmax.f32 %v570, 0.0
      %v672 = vmax.f32 %v572, 0.0
      %v673 = vmax.f32 %v657, 0.0
      %v674 = vmax.f32 %v576, 0.0
      %v675 = vmax.f32 %v578, 0.0
      %v676 = vmax.f32 %v662, 0.0
      %v677 = vld [vmem:[%s3] sm:$0xff]
      %v678 = vld [vmem:[%s3 + $0x8] sm:$0xff]
      %v679 = vld [vmem:[%s4] sm:$0xff]
      %v680 = vld [vmem:[%s4 + $0x8] sm:$0xff]
      %682 = vset.pattern.permute.xlu0 0
      %683 = vperm.xlu0 %682, %v679
      %v684 = vpop.permute.xlu0 %683
      %687 = vset.pattern.permute.xlu0 0
      %688 = vperm.xlu0 %687, %v680
      %v689 = vpop.permute.xlu0 %688
      %vm691 = vcmask 261120
      %v693 = vsel %vm691, %v677, 0
      %v696 = vsel %vm691, %v678, 0
      %698 = vmatprep.subr.mxu0 %v666
      %699 = vmatpush1.msra.mxu0 %v665
      %700 = vmatprep.subr.mxu0 %v669
      %701 = vmatpush1.msra.mxu0 %v668
      %702 = vmatprep.subr.mxu0 %v672
      %703 = vmatpush1.msra.mxu0 %v671
      %704 = vmatprep.subr.mxu0 %v675
      %705 = vmatpush1.msra.mxu0 %v674
      %706 = vmatprep.subr.mxu0 0.0
      %707 = vmatpush1.msra.mxu0 0.0
      %708 = vmatprep.subr.mxu0 0.0
      %709 = vmatpush1.msra.mxu0 0.0
      %710 = vmatprep.subr.mxu0 0.0
      %711 = vmatpush1.msra.mxu0 0.0
      %712 = vmatprep.subr.mxu0 0.0
      %713 = vmatpush1.msra.mxu0 0.0
      %714 = vmatprep.subr.mxu0 0.0
      %715 = vmatpush1.msra.mxu0 0.0
      %716 = vmatprep.subr.mxu0 0.0
      %717 = vmatpush1.msra.mxu0 0.0
      %718 = vmatprep.subr.mxu0 0.0
      %719 = vmatpush1.msra.mxu0 0.0
      %720 = vmatprep.subr.mxu0 0.0
      %721 = vmatpush1.msra.mxu0 0.0
      %722 = vmatprep.subr.mxu0 0.0
      %723 = vmatpush1.msra.mxu0 0.0
      %724 = vmatprep.subr.mxu0 0.0
      %725 = vmatpush1.msra.mxu0 0.0
      %726 = vmatprep.subr.mxu0 0.0
      %727 = vmatpush1.msra.mxu0 0.0
      %728 = vmatprep.subr.mxu0 0.0
      %729 = vmatpush1.msra.mxu0 0.0
      %730 = vmatprep.subr.mxu0 0.0
      %731 = vmatpush1.msra.mxu0 0.0
      %732 = vmatprep.subr.mxu0 0.0
      %733 = vmatpush1.msra.mxu0 0.0
      %734 = vmatprep.subr.mxu0 0.0
      %735 = vmatpush1.msra.mxu0 0.0
      %736 = vmatprep.subr.mxu0 0.0
      %737 = vmatpush1.msra.mxu0 0.0
      %738 = vmatprep.subr.mxu0 0.0
      %739 = vmatpush1.msra.mxu0 0.0
      %740 = vmatprep.subr.mxu0 0.0
      %741 = vmatpush1.msra.mxu0 0.0
      %742 = vmatprep.subr.mxu0 0.0
      %743 = vmatpush1.msra.mxu0 0.0
      %744 = vmatprep.subr.mxu0 0.0
      %745 = vmatpush1.msra.mxu0 0.0
      %746 = vmatprep.subr.mxu0 0.0
      %747 = vmatpush1.msra.mxu0 0.0
      %748 = vmatprep.subr.mxu0 0.0
      %749 = vmatpush1.msra.mxu0 0.0
      %750 = vmatprep.subr.mxu0 0.0
      %751 = vmatpush1.msra.mxu0 0.0
      %752 = vmatprep.subr.mxu0 0.0
      %753 = vmatpush1.msra.mxu0 0.0
      %754 = vmatprep.subr.mxu0 0.0
      %755 = vmatpush1.msra.mxu0 0.0
      %756 = vmatprep.subr.mxu0 0.0
      %757 = vmatpush1.msra.mxu0 0.0
      %758 = vmatprep.subr.mxu0 0.0
      %759 = vmatpush1.msra.mxu0 0.0
      %760 = vmatprep.subr.mxu0 0.0
      %761 = vmatpush1.msra.mxu0 0.0
      %762 = vmatprep.mubr.f32.mxu0 0.0
      %763 = vmatmul.mubr.f32.gmra.mrb[0].mxu0 %v693
      %v764 = vpop.f32.mrb[0].mxu0
      %v765 = vadd.f32 %v684, %v764
      %v766 = vpop.f32.mrb[0].mxu0
      %v767 = vadd.f32 %v684, %v766
      %768 = vmatprep.mubr.f32.mxu0 0.0
      %769 = vmatmul.mubr.f32.gmra.mrb[0].mxu0 %v696
      %v770 = vpop.f32.mrb[0].mxu0
      %v771 = vadd.f32 %v689, %v770
      %v772 = vpop.f32.mrb[0].mxu0
      %v773 = vadd.f32 %v689, %v772
      %774 = vdwg.mxu0
      %775 = vmatprep.subr.mxu0 0.0
      %776 = vmatpush1.msra.mxu0 %v667
      %777 = vmatprep.subr.mxu0 0.0
      %778 = vmatpush1.msra.mxu0 %v670
      %779 = vmatprep.subr.mxu0 0.0
      %780 = vmatpush1.msra.mxu0 %v673
      %781 = vmatprep.subr.mxu0 0.0
      %782 = vmatpush1.msra.mxu0 %v676
      %783 = vmatprep.subr.mxu0 0.0
      %784 = vmatpush1.msra.mxu0 0.0
      %785 = vmatprep.subr.mxu0 0.0
      %786 = vmatpush1.msra.mxu0 0.0
      %787 = vmatprep.subr.mxu0 0.0
      %788 = vmatpush1.msra.mxu0 0.0
      %789 = vmatprep.subr.mxu0 0.0
      %790 = vmatpush1.msra.mxu0 0.0
      %791 = vmatprep.subr.mxu0 0.0
      %792 = vmatpush1.msra.mxu0 0.0
      %793 = vmatprep.subr.mxu0 0.0
      %794 = vmatpush1.msra.mxu0 0.0
      %795 = vmatprep.subr.mxu0 0.0
      %796 = vmatpush1.msra.mxu0 0.0
      %797 = vmatprep.subr.mxu0 0.0
      %798 = vmatpush1.msra.mxu0 0.0
      %799 = vmatprep.subr.mxu0 0.0
      %800 = vmatpush1.msra.mxu0 0.0
      %801 = vmatprep.subr.mxu0 0.0
      %802 = vmatpush1.msra.mxu0 0.0
      %803 = vmatprep.subr.mxu0 0.0
      %804 = vmatpush1.msra.mxu0 0.0
      %805 = vmatprep.subr.mxu0 0.0
      %806 = vmatpush1.msra.mxu0 0.0
      %807 = vmatprep.subr.mxu0 0.0
      %808 = vmatpush1.msra.mxu0 0.0
      %809 = vmatprep.subr.mxu0 0.0
      %810 = vmatpush1.msra.mxu0 0.0
      %811 = vmatprep.subr.mxu0 0.0
      %812 = vmatpush1.msra.mxu0 0.0
      %813 = vmatprep.subr.mxu0 0.0
      %814 = vmatpush1.msra.mxu0 0.0
      %815 = vmatprep.subr.mxu0 0.0
      %816 = vmatpush1.msra.mxu0 0.0
      %817 = vmatprep.subr.mxu0 0.0
      %818 = vmatpush1.msra.mxu0 0.0
      %819 = vmatprep.subr.mxu0 0.0
      %820 = vmatpush1.msra.mxu0 0.0
      %821 = vmatprep.subr.mxu0 0.0
      %822 = vmatpush1.msra.mxu0 0.0
      %823 = vmatprep.subr.mxu0 0.0
      %824 = vmatpush1.msra.mxu0 0.0
      %825 = vmatprep.subr.mxu0 0.0
      %826 = vmatpush1.msra.mxu0 0.0
      %827 = vmatprep.subr.mxu0 0.0
      %828 = vmatpush1.msra.mxu0 0.0
      %829 = vmatprep.subr.mxu0 0.0
      %830 = vmatpush1.msra.mxu0 0.0
      %831 = vmatprep.subr.mxu0 0.0
      %832 = vmatpush1.msra.mxu0 0.0
      %833 = vmatprep.subr.mxu0 0.0
      %834 = vmatpush1.msra.mxu0 0.0
      %835 = vmatprep.subr.mxu0 0.0
      %836 = vmatpush1.msra.mxu0 0.0
      %837 = vmatprep.subr.mxu0 0.0
      %838 = vmatpush1.msra.mxu0 0.0
      %839 = vmatprep.mubr.f32.mxu0 0.0
      %840 = vmatmul.mubr.f32.gmra.mrb[0].mxu0 %v693
      %v841 = vpop.f32.mrb[0].mxu0
      %v842 = vadd.f32 %v684, %v841
      %v843 = vpop.f32.mrb[0].mxu0
      %844 = vmatprep.mubr.f32.mxu0 0.0
      %845 = vmatmul.mubr.f32.gmra.mrb[0].mxu0 %v696
      %v846 = vpop.f32.mrb[0].mxu0
      %v847 = vadd.f32 %v689, %v846
      %v848 = vpop.f32.mrb[0].mxu0
      %849 = vdwg.mxu0
      %850 = vst [vmem:[%s224] sm:$0xff] %v765
      %851 = vst [vmem:[%s224 + $0x8] sm:$0xff] %v767
      %852 = vst [vmem:[%s224 + $0x10] sm:$0xff] %v842
      %853 = vst [vmem:[%s224 + $0x18] sm:$0xff] %v771
      %854 = vst [vmem:[%s224 + $0x20] sm:$0xff] %v773
      %855 = vst [vmem:[%s224 + $0x28] sm:$0xff] %v847
      %p856 = scmp.lt.s32.totalorder %s16, 1
      %s857 = scalar_select %p856, %s16, 1
      %s858 = smul.addr %s857, 6
      %s859 = smul.addr %s858, 8
      %s860 = scalar_lea.vmem %s5, %s859
      // Predicated region
      $region41: #{mtl_shared_enc_forward.1} parent=39 // pred_check
        %p861 = pneg %p144
      $region42: #{mtl_shared_enc_forward.1} parent=39 // pred_check_branch
        %863 = sbr.rel (%p861) target = $region44
      $region43: #{mtl_shared_enc_forward.1} parent=39 // pred_region
        _
      $region44: #{mtl_shared_enc_forward.1} parent=39 // pred_fallthru
        _
    $region40: #{mtl_shared_enc_forward.1} parent=5 // pred_fallthru
      _
    %p864 = scmp.le.s32.totalorder 2, %s11
    // Predicated region
    $region45: #{mtl_shared_enc_forward.1} parent=5 // pred_check
      %p865 = pneg %p864
    $region46: #{mtl_shared_enc_forward.1} parent=5 // pred_check_branch
      %867 = sbr.rel (%p865) target = $region48
    $region47: #{mtl_shared_enc_forward.1} parent=5 // pred_region
      %s868 = ssub.s32 %s11, 2
      // Predicated region
      $region49: #{mtl_shared_enc_forward.1} parent=47 // pred_check
        %p869 = pneg %p150
      $region50: #{mtl_shared_enc_forward.1} parent=47 // pred_check_branch
        %871 = sbr.rel (%p869) target = $region52
      $region51: #{mtl_shared_enc_forward.1} parent=47 // pred_region
        %p872 = scmp.lt.s32.totalorder %s17, 1
        %s873 = scalar_select %p872, %s17, 1
        %s874 = smul.addr %s873, 6
        %s875 = smul.addr %s874, 8
        %s876 = scalar_lea.vmem %s5, %s875
      $region52: #{mtl_shared_enc_forward.1} parent=47 // pred_fallthru
        _
    $region48: #{mtl_shared_enc_forward.1} parent=5 // pred_fallthru
      _
  $region6: #{mtl_shared_enc_forward.1} parent=0 // loop_footer
    %s15 = sadd.s32 1, %s11
  $region7: #{mtl_shared_enc_forward.1} parent=0 // loop_footer_branch
    %10 = sbr.rel target = $region3
  $region8: #{mtl_shared_enc_forward.1} parent=0 // loop_exit
    _

</llo_original>
